<compile_context>
chip_gen: v7x
topology: tpu7x:2x2x1
jax: 0.10.0
libtpu: 0.0.40
codegen_flags: <defaults>
</compile_context>

<pallas_src>
import jax
import jax.numpy as jnp
from jax.experimental import pallas as pl
from jax.experimental.pallas import tpu as pltpu

LANE = 128      # vreg lane width
SUBLANE = 8     # f32 sublane count
_TILE_CANDIDATES = (4096, 2048, 1024, 512, 256, 128, 64, 32, 16)


def _round_up(n: int, m: int) -> int:
    return ((n + m - 1) // m) * m


def _pad2(a, rows: int, cols: int):
    r, c = a.shape
    if r == rows and c == cols:
        return a
    return jnp.pad(a, ((0, rows - r), (0, cols - c)))


def _buffered_supported() -> bool:
    """Narrow feature probe for BlockSpec(pipeline_mode=pl.Buffered(1))."""
    try:
        pl.BlockSpec((8, 128), lambda i: (0, 0), pipeline_mode=pl.Buffered(1))
        return True
    except (AttributeError, TypeError):
        return False


_HAS_BUFFERED = _buffered_supported()


def _hw_budget():
    """Returns (vmem_budget_bytes, min_grid_steps), generation-aware."""
    try:
        cap = int(pltpu.get_tpu_info().vmem_capacity_bytes)
    except Exception:
        cap = 64 << 20          # conservative: assume smallest per-core VMEM (v7x)
    budget = int(0.75 * cap)    # headroom for compiler scratch / semaphores
    two_cores = cap <= (96 << 20)   # v7x: 64 MiB/TC and 2 TensorCores per chip
    min_steps = 2 if two_cores else 1
    return budget, min_steps


def _tile_vmem_bytes(t, in_p, hid_p, out_p, x_itemsize, out_itemsize) -> int:
    """VMEM working-set estimate for one batch tile of t rows."""
    bf16, f32 = 2, 4
    weights = (in_p * hid_p + 2 * hid_p * hid_p + hid_p * out_p) * bf16  # 1-buffered
    biases = (3 * hid_p + out_p) * f32
    io = 2 * t * in_p * x_itemsize + 2 * t * out_p * out_itemsize        # 2-buffered
    acts = 3 * t * hid_p * (f32 + bf16)   # f32 intermediates + bf16 MXU copies
    return weights + biases + io + acts


def _pick_batch_tile(B, fits, min_steps) -> int:
    """Largest 16-aligned tile that divides B, fits the VMEM budget and leaves
    enough grid steps (>= 2, ideally even, on v7x megacore)."""
    if min_steps <= 1 and fits(B):
        return B                                    # v5e/v6e: one big tile
    if min_steps >= 2:                              # v7x: prefer even step count
        for cand in _TILE_CANDIDATES:
            if B % cand == 0 and (B // cand) % 2 == 0 and fits(cand):
                return cand
    for cand in _TILE_CANDIDATES:
        if B % cand == 0 and (B // cand) >= 2 and fits(cand):
            return cand
    return B                                        # fall back: single step


def _make_decoder_kernel(n_splits: int, rows_per_split: int):
    """Fused 4x Linear + 3x ReLU on one batch tile, optionally processed as
    n_splits independent row sub-tiles (scheduler overlaps MXU and VPU)."""

    def kernel(x_ref, w1_ref, b1_ref, w2_ref, b2_ref,
               w3_ref, b3_ref, w4_ref, b4_ref, out_ref):
        f32 = jnp.float32
        bf16 = jnp.bfloat16
        w1 = w1_ref[...]
        w2 = w2_ref[...]
        w3 = w3_ref[...]
        w4 = w4_ref[...]
        b1 = b1_ref[...]
        b2 = b2_ref[...]
        b3 = b3_ref[...]
        b4 = b4_ref[...]
        for s in range(n_splits):          # static unroll; chains are independent
            rows = pl.ds(s * rows_per_split, rows_per_split)
            x = x_ref[rows, :].astype(bf16)            # cast in-kernel (f32 in HBM)
            # decoder: Linear -> ReLU -> Linear -> ReLU
            h = jnp.dot(x, w1, preferred_element_type=f32)
            h = jnp.maximum(h + b1, 0.0)
            h = jnp.dot(h.astype(bf16), w2, preferred_element_type=f32)
            h = jnp.maximum(h + b2, 0.0)
            # mu head: Linear -> ReLU -> Linear
            h = jnp.dot(h.astype(bf16), w3, preferred_element_type=f32)
            h = jnp.maximum(h + b3, 0.0)
            mu = jnp.dot(h.astype(bf16), w4, preferred_element_type=f32)
            out_ref[rows, :] = (mu + b4).astype(out_ref.dtype)

    return kernel


def prepare_params(params):
    """One-time: pad weights/biases lane-dense and cast weights to bf16.
    Zero padding is exact through ReLU (padded rows/cols/bias entries are 0)."""
    input_dim, hidden_dim = params["w1"].shape
    output_dim = params["w4"].shape[1]
    in_p = _round_up(input_dim, LANE)
    hid_p = _round_up(hidden_dim, LANE)
    out_p = _round_up(output_dim, LANE)
    return dict(
        w1=_pad2(params["w1"], in_p, hid_p).astype(jnp.bfloat16),
        w2=_pad2(params["w2"], hid_p, hid_p).astype(jnp.bfloat16),
        w3=_pad2(params["w3"], hid_p, hid_p).astype(jnp.bfloat16),
        w4=_pad2(params["w4"], hid_p, out_p).astype(jnp.bfloat16),
        b1=_pad2(params["b1"], 1, hid_p).astype(jnp.float32),
        b2=_pad2(params["b2"], 1, hid_p).astype(jnp.float32),
        b3=_pad2(params["b3"], 1, hid_p).astype(jnp.float32),
        b4=_pad2(params["b4"], 1, out_p).astype(jnp.float32),
        dims=(input_dim, hidden_dim, output_dim, in_p, hid_p, out_p),
    )


def decoder_forward(x, prepared, *, batch_tile=None, out_dtype=None):
    """x: [B, input_dim].  prepared: output of prepare_params()."""
    B, input_dim = x.shape
    in_dim, hidden_dim, output_dim, in_p, hid_p, out_p = prepared["dims"]
    assert input_dim == in_dim, "x feature dim does not match prepared params"
    if out_dtype is None:
        out_dtype = x.dtype

    # Lane-pad x only when needed; keep original dtype (bf16 cast is in-kernel).
    xp = _pad2(x, B, in_p) if input_dim != in_p else x

    x_itemsize = jnp.dtype(xp.dtype).itemsize
    out_itemsize = jnp.dtype(out_dtype).itemsize
    budget, min_steps = _hw_budget()

    weight_bytes = (in_p * hid_p + 2 * hid_p * hid_p + hid_p * out_p) * 2
    # TODO(synk): K-tiled reduction grid axis for very large hidden_dim where
    # the resident bf16 weights alone would blow the per-core VMEM budget.
    assert weight_bytes <= budget // 2, (
        "hidden_dim too large for the weights-resident kernel on this TPU")

    def fits(t):
        return _tile_vmem_bytes(t, in_p, hid_p, out_p,
                                x_itemsize, out_itemsize) * 2 <= budget

    if batch_tile is None:
        batch_tile = _pick_batch_tile(B, fits, min_steps)
    assert B % batch_tile == 0, "batch must be divisible by batch_tile"
    if batch_tile != B:
        assert batch_tile % 16 == 0, (
            "batch_tile must be a multiple of 16 (bf16 sublane packing) "
            "when tiling the batch")
    grid = (B // batch_tile,)

    # Split large tiles into two independent row-halves inside the kernel so
    # the MXU keeps running during the other half's VPU epilogue.
    n_splits = 2 if (batch_tile >= 256 and batch_tile % 32 == 0) else 1
    rows_per_split = batch_tile // n_splits
    kernel = _make_decoder_kernel(n_splits, rows_per_split)

    est = _tile_vmem_bytes(batch_tile, in_p, hid_p, out_p,
                           x_itemsize, out_itemsize)
    vmem_limit = int(min(budget, max(32 << 20, 2 * est)))

    flops = 2 * B * (in_p * hid_p + 2 * hid_p * hid_p + hid_p * out_p)
    bytes_accessed = (xp.size * x_itemsize
                      + weight_bytes
                      + (3 * hid_p + out_p) * 4
                      + B * out_p * out_itemsize)

    compiler_params = pltpu.CompilerParams(
        dimension_semantics=("parallel",),
        vmem_limit_bytes=vmem_limit)
    cost = pl.CostEstimate(flops=flops, transcendentals=0,
                           bytes_accessed=bytes_accessed)

    def rep(shape):
        # Weights/biases are replicated across batch tiles (constant index_map);
        # single-buffer them so they don't pay a second pipeline buffer.
        if _HAS_BUFFERED:
            return pl.BlockSpec(shape, lambda i: (0, 0),
                                pipeline_mode=pl.Buffered(1))
        return pl.BlockSpec(shape, lambda i: (0, 0))

    w1, w2, w3, w4 = prepared["w1"], prepared["w2"], prepared["w3"], prepared["w4"]
    b1, b2, b3, b4 = prepared["b1"], prepared["b2"], prepared["b3"], prepared["b4"]

    mu_padded = pl.pallas_call(
        kernel,
        out_shape=jax.ShapeDtypeStruct((B, out_p), out_dtype),
        grid_spec=pltpu.PrefetchScalarGridSpec(
            num_scalar_prefetch=0,
            grid=grid,
            in_specs=[
                pl.BlockSpec((batch_tile, in_p), lambda i: (i, 0)),
                rep(w1.shape), rep(b1.shape),
                rep(w2.shape), rep(b2.shape),
                rep(w3.shape), rep(b3.shape),
                rep(w4.shape), rep(b4.shape),
            ],
            out_specs=pl.BlockSpec((batch_tile, out_p), lambda i: (i, 0)),
        ),
        compiler_params=compiler_params,
        cost_estimate=cost,
    )(xp, w1, b1, w2, b2, w3, b3, w4, b4)

    return mu_padded[:, :output_dim]


def init_params(key, input_dim, output_dim, hidden_dim):
    """Deterministic synthetic init (PyTorch-Linear-like uniform fan-in)."""
    ks = jax.random.split(key, 8)

    def linear(kw, kb, fan_in, fan_out):
        bound = 1.0 / jnp.sqrt(fan_in)
        # stored as [in, out] so the kernel computes x @ W
        w = jax.random.uniform(kw, (fan_in, fan_out), jnp.float32, -bound, bound)
        b = jax.random.uniform(kb, (1, fan_out), jnp.float32, -bound, bound)
        return w, b

    w1, b1 = linear(ks[0], ks[1], input_dim, hidden_dim)
    w2, b2 = linear(ks[2], ks[3], hidden_dim, hidden_dim)
    w3, b3 = linear(ks[4], ks[5], hidden_dim, hidden_dim)
    w4, b4 = linear(ks[6], ks[7], hidden_dim, output_dim)
    return dict(w1=w1, b1=b1, w2=w2, b2=b2, w3=w3, b3=b3, w4=w4, b4=b4)


def decoder_forward_ref(x, p):
    """Pure-JAX f32 reference for correctness check."""
    h = jnp.maximum(x @ p["w1"] + p["b1"], 0.0)
    h = jnp.maximum(h @ p["w2"] + p["b2"], 0.0)
    h = jnp.maximum(h @ p["w3"] + p["b3"], 0.0)
    return h @ p["w4"] + p["b4"]


if __name__ == "__main__":
    input_dim, output_dim, hidden_dim = 16, 16, 32
    batch = 8

    key = jax.random.PRNGKey(0)
    kx, kp = jax.random.split(key)
    x = jax.random.normal(kx, (batch, input_dim), jnp.float32)
    params = init_params(kp, input_dim, output_dim, hidden_dim)

    prepared = prepare_params(params)      # one-time pad + bf16 cast
    mu = decoder_forward(x, prepared)
    mu = jax.block_until_ready(mu)

    mu_ref = decoder_forward_ref(x, params)
    assert mu.shape == (batch, output_dim)
    # bf16 MXU operands with f32 accumulate vs. the pure-f32 reference.
    assert jnp.allclose(mu, mu_ref, atol=2e-2, rtol=2e-2), "mismatch vs reference"

    print("KERNEL_OK")
</pallas_src>

<mosaic_0001>
module attributes {stable_mosaic.version = 11 : i64} {
  func.func @kernel(%arg0: i32, %arg1: memref<8x128xf32, #tpu.memory_space<vmem>>, %arg2: memref<128x128xbf16, #tpu.memory_space<vmem>>, %arg3: memref<1x128xf32, #tpu.memory_space<vmem>>, %arg4: memref<128x128xbf16, #tpu.memory_space<vmem>>, %arg5: memref<1x128xf32, #tpu.memory_space<vmem>>, %arg6: memref<128x128xbf16, #tpu.memory_space<vmem>>, %arg7: memref<1x128xf32, #tpu.memory_space<vmem>>, %arg8: memref<128x128xbf16, #tpu.memory_space<vmem>>, %arg9: memref<1x128xf32, #tpu.memory_space<vmem>>, %arg10: memref<8x128xf32, #tpu.memory_space<vmem>>) attributes {dimension_semantics = [#tpu.dimension_semantics<parallel>], iteration_bounds = array<i64: 1>, scalar_prefetch = 0 : i64, scratch_operands = 0 : i64, tpu.core_type = #tpu.core_type<tc>, window_params = [{transform_indices = @transform_0, window_bounds = array<i64: 8, 128>}, {pipeline_mode = #tpu.pipeline_mode<synchronous>, transform_indices = @transform_1, window_bounds = array<i64: 128, 128>}, {pipeline_mode = #tpu.pipeline_mode<synchronous>, transform_indices = @transform_2, window_bounds = array<i64: 1, 128>}, {pipeline_mode = #tpu.pipeline_mode<synchronous>, transform_indices = @transform_3, window_bounds = array<i64: 128, 128>}, {pipeline_mode = #tpu.pipeline_mode<synchronous>, transform_indices = @transform_4, window_bounds = array<i64: 1, 128>}, {pipeline_mode = #tpu.pipeline_mode<synchronous>, transform_indices = @transform_5, window_bounds = array<i64: 128, 128>}, {pipeline_mode = #tpu.pipeline_mode<synchronous>, transform_indices = @transform_6, window_bounds = array<i64: 1, 128>}, {pipeline_mode = #tpu.pipeline_mode<synchronous>, transform_indices = @transform_7, window_bounds = array<i64: 128, 128>}, {pipeline_mode = #tpu.pipeline_mode<synchronous>, transform_indices = @transform_8, window_bounds = array<i64: 1, 128>}, {transform_indices = @transform_9, window_bounds = array<i64: 8, 128>}]} {
    %c0 = arith.constant 0 : index
    %c0_0 = arith.constant 0 : index
    %0 = vector.load %arg2[%c0, %c0_0] : memref<128x128xbf16, #tpu.memory_space<vmem>>, vector<128x128xbf16>
    %c0_1 = arith.constant 0 : index
    %c0_2 = arith.constant 0 : index
    %1 = vector.load %arg4[%c0_1, %c0_2] : memref<128x128xbf16, #tpu.memory_space<vmem>>, vector<128x128xbf16>
    %c0_3 = arith.constant 0 : index
    %c0_4 = arith.constant 0 : index
    %2 = vector.load %arg6[%c0_3, %c0_4] : memref<128x128xbf16, #tpu.memory_space<vmem>>, vector<128x128xbf16>
    %c0_5 = arith.constant 0 : index
    %c0_6 = arith.constant 0 : index
    %3 = vector.load %arg8[%c0_5, %c0_6] : memref<128x128xbf16, #tpu.memory_space<vmem>>, vector<128x128xbf16>
    %c0_7 = arith.constant 0 : index
    %c0_8 = arith.constant 0 : index
    %4 = vector.load %arg3[%c0_7, %c0_8] : memref<1x128xf32, #tpu.memory_space<vmem>>, vector<1x128xf32>
    %c0_9 = arith.constant 0 : index
    %c0_10 = arith.constant 0 : index
    %5 = vector.load %arg5[%c0_9, %c0_10] : memref<1x128xf32, #tpu.memory_space<vmem>>, vector<1x128xf32>
    %c0_11 = arith.constant 0 : index
    %c0_12 = arith.constant 0 : index
    %6 = vector.load %arg7[%c0_11, %c0_12] : memref<1x128xf32, #tpu.memory_space<vmem>>, vector<1x128xf32>
    %c0_13 = arith.constant 0 : index
    %c0_14 = arith.constant 0 : index
    %7 = vector.load %arg9[%c0_13, %c0_14] : memref<1x128xf32, #tpu.memory_space<vmem>>, vector<1x128xf32>
    %c0_15 = arith.constant 0 : index
    %c0_16 = arith.constant 0 : index
    %8 = vector.load %arg1[%c0_15, %c0_16] : memref<8x128xf32, #tpu.memory_space<vmem>>, vector<8x128xf32>
    %9 = arith.truncf %8 : vector<8x128xf32> to vector<8x128xbf16>
    %cst = arith.constant dense<0.000000e+00> : vector<8x128xf32>
    %10 = tpu.matmul %9, %0, %cst {dimension_numbers = #tpu.dot_dimension_numbers<[1], [0], [0], [1], [0, 0, 1, 1], [], []>} : vector<8x128xbf16>, vector<128x128xbf16>, vector<8x128xf32> -> vector<8x128xf32>
    %11 = vector.broadcast %4 : vector<1x128xf32> to vector<8x128xf32>
    %12 = arith.addf %10, %11 : vector<8x128xf32>
    %cst_17 = arith.constant 0.000000e+00 : f32
    %13 = vector.broadcast %cst_17 : f32 to vector<8x128xf32>
    %14 = arith.maximumf %12, %13 : vector<8x128xf32>
    %15 = arith.truncf %14 : vector<8x128xf32> to vector<8x128xbf16>
    %cst_18 = arith.constant dense<0.000000e+00> : vector<8x128xf32>
    %16 = tpu.matmul %15, %1, %cst_18 {dimension_numbers = #tpu.dot_dimension_numbers<[1], [0], [0], [1], [0, 0, 1, 1], [], []>} : vector<8x128xbf16>, vector<128x128xbf16>, vector<8x128xf32> -> vector<8x128xf32>
    %17 = vector.broadcast %5 : vector<1x128xf32> to vector<8x128xf32>
    %18 = arith.addf %16, %17 : vector<8x128xf32>
    %cst_19 = arith.constant 0.000000e+00 : f32
    %19 = vector.broadcast %cst_19 : f32 to vector<8x128xf32>
    %20 = arith.maximumf %18, %19 : vector<8x128xf32>
    %21 = arith.truncf %20 : vector<8x128xf32> to vector<8x128xbf16>
    %cst_20 = arith.constant dense<0.000000e+00> : vector<8x128xf32>
    %22 = tpu.matmul %21, %2, %cst_20 {dimension_numbers = #tpu.dot_dimension_numbers<[1], [0], [0], [1], [0, 0, 1, 1], [], []>} : vector<8x128xbf16>, vector<128x128xbf16>, vector<8x128xf32> -> vector<8x128xf32>
    %23 = vector.broadcast %6 : vector<1x128xf32> to vector<8x128xf32>
    %24 = arith.addf %22, %23 : vector<8x128xf32>
    %cst_21 = arith.constant 0.000000e+00 : f32
    %25 = vector.broadcast %cst_21 : f32 to vector<8x128xf32>
    %26 = arith.maximumf %24, %25 : vector<8x128xf32>
    %27 = arith.truncf %26 : vector<8x128xf32> to vector<8x128xbf16>
    %cst_22 = arith.constant dense<0.000000e+00> : vector<8x128xf32>
    %28 = tpu.matmul %27, %3, %cst_22 {dimension_numbers = #tpu.dot_dimension_numbers<[1], [0], [0], [1], [0, 0, 1, 1], [], []>} : vector<8x128xbf16>, vector<128x128xbf16>, vector<8x128xf32> -> vector<8x128xf32>
    %29 = vector.broadcast %7 : vector<1x128xf32> to vector<8x128xf32>
    %30 = arith.addf %28, %29 : vector<8x128xf32>
    %c0_23 = arith.constant 0 : index
    %c0_24 = arith.constant 0 : index
    %31 = vector.load %arg10[%c0_23, %c0_24] : memref<8x128xf32, #tpu.memory_space<vmem>>, vector<8x128xf32>
    tpu.vector_store %arg10[%c0_23, %c0_24], %30 {strides = array<i32>} : memref<8x128xf32, #tpu.memory_space<vmem>>, vector<8x128xf32>,
    return
  }
  func.func @transform_0(%arg0: i32) -> (i32, i32) {
    %c0_i32 = arith.constant 0 : i32
    %c0_i32_0 = arith.constant 0 : i32
    return %arg0, %c0_i32 : i32, i32
  }
  func.func @transform_1(%arg0: i32) -> (i32, i32) {
    %c0_i32 = arith.constant 0 : i32
    %c0_i32_0 = arith.constant 0 : i32
    %c0_i32_1 = arith.constant 0 : i32
    return %c0_i32, %c0_i32_0 : i32, i32
  }
  func.func @transform_2(%arg0: i32) -> (i32, i32) {
    %c0_i32 = arith.constant 0 : i32
    %c0_i32_0 = arith.constant 0 : i32
    %c0_i32_1 = arith.constant 0 : i32
    return %c0_i32, %c0_i32_0 : i32, i32
  }
  func.func @transform_3(%arg0: i32) -> (i32, i32) {
    %c0_i32 = arith.constant 0 : i32
    %c0_i32_0 = arith.constant 0 : i32
    %c0_i32_1 = arith.constant 0 : i32
    return %c0_i32, %c0_i32_0 : i32, i32
  }
  func.func @transform_4(%arg0: i32) -> (i32, i32) {
    %c0_i32 = arith.constant 0 : i32
    %c0_i32_0 = arith.constant 0 : i32
    %c0_i32_1 = arith.constant 0 : i32
    return %c0_i32, %c0_i32_0 : i32, i32
  }
  func.func @transform_5(%arg0: i32) -> (i32, i32) {
    %c0_i32 = arith.constant 0 : i32
    %c0_i32_0 = arith.constant 0 : i32
    %c0_i32_1 = arith.constant 0 : i32
    return %c0_i32, %c0_i32_0 : i32, i32
  }
  func.func @transform_6(%arg0: i32) -> (i32, i32) {
    %c0_i32 = arith.constant 0 : i32
    %c0_i32_0 = arith.constant 0 : i32
    %c0_i32_1 = arith.constant 0 : i32
    return %c0_i32, %c0_i32_0 : i32, i32
  }
  func.func @transform_7(%arg0: i32) -> (i32, i32) {
    %c0_i32 = arith.constant 0 : i32
    %c0_i32_0 = arith.constant 0 : i32
    %c0_i32_1 = arith.constant 0 : i32
    return %c0_i32, %c0_i32_0 : i32, i32
  }
  func.func @transform_8(%arg0: i32) -> (i32, i32) {
    %c0_i32 = arith.constant 0 : i32
    %c0_i32_0 = arith.constant 0 : i32
    %c0_i32_1 = arith.constant 0 : i32
    return %c0_i32, %c0_i32_0 : i32, i32
  }
  func.func @transform_9(%arg0: i32) -> (i32, i32) {
    %c0_i32 = arith.constant 0 : i32
    %c0_i32_0 = arith.constant 0 : i32
    return %arg0, %c0_i32 : i32, i32
  }
}

</mosaic_0001>

<llo_original>
// kernel: tpu_custom_call.1
$region0: #{tpu_custom_call.1}
  #allocation0 [shape = 'u32[]', space=smem, size = 0x4, offset = 0x4, fixed_abs, tag = 'smem constant byte address 0x4 - core index']
  #allocation1 [shape = 'u32[144,128]{1,0:T(1,128)}', space=vmem, size = 0x12000, scoped, tag = 'internal scratch']
  %s0 = inlined_call_operand.hbm [shape: f32[8,128], index: 0, kind: input, shape index: {}]
  %s1 = inlined_call_operand.hbm [shape: bf16[128,128], index: 1, kind: input, shape index: {}]
  %s2 = inlined_call_operand.vmem [shape: f32[1,128], index: 2, kind: input, shape index: {}]
  %s3 = inlined_call_operand.hbm [shape: bf16[128,128], index: 3, kind: input, shape index: {}]
  %s4 = inlined_call_operand.vmem [shape: f32[1,128], index: 4, kind: input, shape index: {}]
  %s5 = inlined_call_operand.hbm [shape: bf16[128,128], index: 5, kind: input, shape index: {}]
  %s6 = inlined_call_operand.vmem [shape: f32[1,128], index: 6, kind: input, shape index: {}]
  %s7 = inlined_call_operand.hbm [shape: bf16[128,128], index: 7, kind: input, shape index: {}]
  %s8 = inlined_call_operand.vmem [shape: f32[1,128], index: 8, kind: input, shape index: {}]
  %s9 = inlined_call_operand.hbm [shape: f32[8,128], index: 9, kind: output, shape index: {}]
  %s10 = sld [smem:[#allocation0]]
  $region66: #{tpu_custom_call.1} parent=0
    _
  %s12 = ssub.s32 1, %s10
  %s13 = scalar_select 0, %s12, %s10
  $region1: #{tpu_custom_call.1} parent=0
    #allocation2 [shape = 'u8[4096]{0}', space=vmem, size = 0x1000, scoped, tag = 'input window, operand 0, single buffered']
    #allocation3 [shape = 's32[1]{0}', space=sflag, size = 0x4, scoped, tag = 'scoped memory for tpu_custom_call.1']
    #allocation4 [shape = 's32[1]{0}', space=sflag, size = 0x4, scoped, tag = 'scoped memory for tpu_custom_call.1']
    #allocation5 [shape = 'u8[32768]{0}', space=vmem, size = 0x8000, scoped, tag = 'input window, operand 1, single buffered']
    #allocation6 [shape = 's32[1]{0}', space=sflag, size = 0x4, scoped, tag = 'scoped memory for tpu_custom_call.1']
    #allocation7 [shape = 'u8[32768]{0}', space=vmem, size = 0x8000, scoped, tag = 'input window, operand 3, single buffered']
    #allocation8 [shape = 'u8[32768]{0}', space=vmem, size = 0x8000, scoped, tag = 'input window, operand 5, single buffered']
    #allocation9 [shape = 's32[1]{0}', space=sflag, size = 0x4, scoped, tag = 'scoped memory for tpu_custom_call.1']
    #allocation10 [shape = 'u8[32768]{0}', space=vmem, size = 0x8000, scoped, tag = 'input window, operand 7, single buffered']
    #allocation11 [shape = 'u8[4096]{0}', space=vmem, size = 0x1000, scoped, tag = 'output window, operand 0, single buffered']
    %14 = vsyncpa [#allocation3], 0
    %15 = vsyncpa [#allocation6], 0
    %16 = vsyncpa [#allocation9], 0
    %17 = vsyncpa [#allocation4], 0
    // Predicated region
    $region2: #{tpu_custom_call.1} parent=1 // pred_check
      _
    $region3: #{tpu_custom_call.1} parent=1 // pred_check_branch
      %19 = sbr.rel (0) target = $region5
    $region4: #{tpu_custom_call.1} parent=1 // pred_region
      %s21 = ssub.s32 128, 128
      %22 = vsyncadd [#allocation3], %s21
      %s24 = sshll.u32 [#allocation2], 4
      %s25 = int_to_ptr.vmem [resolvable:$true] %s24
      %27 = dma.hbm_to_vmem [thread:$0]  %s0, 128, %s25, [#allocation3]
    $region5: #{tpu_custom_call.1} parent=1 // pred_fallthru
      _
    // Predicated region
    $region6: #{tpu_custom_call.1} parent=1 // pred_check
      _
    $region7: #{tpu_custom_call.1} parent=1 // pred_check_branch
      %29 = sbr.rel (0) target = $region9
    $region8: #{tpu_custom_call.1} parent=1 // pred_region
      %s31 = ssub.s32 1024, 1024
      %32 = vsyncadd [#allocation6], %s31
      %s33 = sshll.u32 [#allocation5], 4
      %s34 = int_to_ptr.vmem [resolvable:$true] %s33
      %39 = dma.hbm_to_vmem [thread:$0]  %s1, 1024, %s34, [#allocation6], 64, 64, 4
    $region9: #{tpu_custom_call.1} parent=1 // pred_fallthru
      _
    // Predicated region
    $region10: #{tpu_custom_call.1} parent=1 // pred_check
      _
    $region11: #{tpu_custom_call.1} parent=1 // pred_check_branch
      %41 = sbr.rel (0) target = $region13
    $region12: #{tpu_custom_call.1} parent=1 // pred_region
      _
    $region13: #{tpu_custom_call.1} parent=1 // pred_fallthru
      _
    // Predicated region
    $region14: #{tpu_custom_call.1} parent=1 // pred_check
      _
    $region15: #{tpu_custom_call.1} parent=1 // pred_check_branch
      %43 = sbr.rel (0) target = $region17
    $region16: #{tpu_custom_call.1} parent=1 // pred_region
      %s45 = ssub.s32 1024, 1024
      %46 = vsyncadd [#allocation6], %s45
      %s47 = sshll.u32 [#allocation7], 4
      %s48 = int_to_ptr.vmem [resolvable:$true] %s47
      %53 = dma.hbm_to_vmem [thread:$0]  %s3, 1024, %s48, [#allocation6], 64, 64, 4
    $region17: #{tpu_custom_call.1} parent=1 // pred_fallthru
      _
    // Predicated region
    $region18: #{tpu_custom_call.1} parent=1 // pred_check
      _
    $region19: #{tpu_custom_call.1} parent=1 // pred_check_branch
      %55 = sbr.rel (0) target = $region21
    $region20: #{tpu_custom_call.1} parent=1 // pred_region
      _
    $region21: #{tpu_custom_call.1} parent=1 // pred_fallthru
      _
    // Predicated region
    $region22: #{tpu_custom_call.1} parent=1 // pred_check
      _
    $region23: #{tpu_custom_call.1} parent=1 // pred_check_branch
      %57 = sbr.rel (0) target = $region25
    $region24: #{tpu_custom_call.1} parent=1 // pred_region
      %s59 = ssub.s32 1024, 1024
      %60 = vsyncadd [#allocation9], %s59
      %s61 = sshll.u32 [#allocation8], 4
      %s62 = int_to_ptr.vmem [resolvable:$true] %s61
      %67 = dma.hbm_to_vmem [thread:$0]  %s5, 1024, %s62, [#allocation9], 64, 64, 4
    $region25: #{tpu_custom_call.1} parent=1 // pred_fallthru
      _
    // Predicated region
    $region26: #{tpu_custom_call.1} parent=1 // pred_check
      _
    $region27: #{tpu_custom_call.1} parent=1 // pred_check_branch
      %69 = sbr.rel (0) target = $region29
    $region28: #{tpu_custom_call.1} parent=1 // pred_region
      _
    $region29: #{tpu_custom_call.1} parent=1 // pred_fallthru
      _
    // Predicated region
    $region30: #{tpu_custom_call.1} parent=1 // pred_check
      _
    $region31: #{tpu_custom_call.1} parent=1 // pred_check_branch
      %71 = sbr.rel (0) target = $region33
    $region32: #{tpu_custom_call.1} parent=1 // pred_region
      %s73 = ssub.s32 1024, 1024
      %74 = vsyncadd [#allocation9], %s73
      %s75 = sshll.u32 [#allocation10], 4
      %s76 = int_to_ptr.vmem [resolvable:$true] %s75
      %81 = dma.hbm_to_vmem [thread:$0]  %s7, 1024, %s76, [#allocation9], 64, 64, 4
    $region33: #{tpu_custom_call.1} parent=1 // pred_fallthru
      _
    // Predicated region
    $region34: #{tpu_custom_call.1} parent=1 // pred_check
      _
    $region35: #{tpu_custom_call.1} parent=1 // pred_check_branch
      %83 = sbr.rel (0) target = $region37
    $region36: #{tpu_custom_call.1} parent=1 // pred_region
      _
    $region37: #{tpu_custom_call.1} parent=1 // pred_fallthru
      _
    // Predicated region
    $region38: #{tpu_custom_call.1} parent=1 // pred_check
      _
    $region39: #{tpu_custom_call.1} parent=1 // pred_check_branch
      %85 = sbr.rel (0) target = $region41
    $region40: #{tpu_custom_call.1} parent=1 // pred_region
      %86 = dma.done [#allocation3], 128
    $region41: #{tpu_custom_call.1} parent=1 // pred_fallthru
      _
    // Predicated region
    $region42: #{tpu_custom_call.1} parent=1 // pred_check
      _
    $region43: #{tpu_custom_call.1} parent=1 // pred_check_branch
      %88 = sbr.rel (0) target = $region45
    $region44: #{tpu_custom_call.1} parent=1 // pred_region
      %89 = dma.done [#allocation6], 1024
    $region45: #{tpu_custom_call.1} parent=1 // pred_fallthru
      _
    // Predicated region
    $region46: #{tpu_custom_call.1} parent=1 // pred_check
      _
    $region47: #{tpu_custom_call.1} parent=1 // pred_check_branch
      %91 = sbr.rel (0) target = $region49
    $region48: #{tpu_custom_call.1} parent=1 // pred_region
      %92 = dma.done [#allocation6], 1024
    $region49: #{tpu_custom_call.1} parent=1 // pred_fallthru
      _
    // Predicated region
    $region50: #{tpu_custom_call.1} parent=1 // pred_check
      _
    $region51: #{tpu_custom_call.1} parent=1 // pred_check_branch
      %94 = sbr.rel (0) target = $region53
    $region52: #{tpu_custom_call.1} parent=1 // pred_region
      %95 = dma.done [#allocation9], 1024
    $region53: #{tpu_custom_call.1} parent=1 // pred_fallthru
      _
    // Predicated region
    $region54: #{tpu_custom_call.1} parent=1 // pred_check
      _
    $region55: #{tpu_custom_call.1} parent=1 // pred_check_branch
      %97 = sbr.rel (0) target = $region57
    $region56: #{tpu_custom_call.1} parent=1 // pred_region
      %98 = dma.done [#allocation9], 1024
    $region57: #{tpu_custom_call.1} parent=1 // pred_fallthru
      _
    %v100 = vld [vmem:[#allocation5] sm:$0xf]
    %v101 = vld [vmem:[#allocation5 + $0x4] sm:$0xf]
    %v102 = vld [vmem:[#allocation5 + $0x8] sm:$0xf]
    %v103 = vld [vmem:[#allocation5 + $0xc] sm:$0xf]
    %v104 = vld [vmem:[#allocation5 + $0x10] sm:$0xf]
    %v105 = vld [vmem:[#allocation5 + $0x14] sm:$0xf]
    %v106 = vld [vmem:[#allocation5 + $0x18] sm:$0xf]
    %v107 = vld [vmem:[#allocation5 + $0x1c] sm:$0xf]
    %v108 = vld [vmem:[#allocation5 + $0x20] sm:$0xf]
    %v109 = vld [vmem:[#allocation5 + $0x24] sm:$0xf]
    %v110 = vld [vmem:[#allocation5 + $0x28] sm:$0xf]
    %v111 = vld [vmem:[#allocation5 + $0x2c] sm:$0xf]
    %v112 = vld [vmem:[#allocation5 + $0x30] sm:$0xf]
    %v113 = vld [vmem:[#allocation5 + $0x34] sm:$0xf]
    %v114 = vld [vmem:[#allocation5 + $0x38] sm:$0xf]
    %v115 = vld [vmem:[#allocation5 + $0x3c] sm:$0xf]
    %v116 = vld [vmem:[#allocation7] sm:$0xf]
    %v117 = vld [vmem:[#allocation7 + $0x4] sm:$0xf]
    %v118 = vld [vmem:[#allocation7 + $0x8] sm:$0xf]
    %v119 = vld [vmem:[#allocation7 + $0xc] sm:$0xf]
    %v120 = vld [vmem:[#allocation7 + $0x10] sm:$0xf]
    %v121 = vld [vmem:[#allocation7 + $0x14] sm:$0xf]
    %v122 = vld [vmem:[#allocation7 + $0x18] sm:$0xf]
    %v123 = vld [vmem:[#allocation7 + $0x1c] sm:$0xf]
    %v124 = vld [vmem:[#allocation7 + $0x20] sm:$0xf]
    %v125 = vld [vmem:[#allocation7 + $0x24] sm:$0xf]
    %v126 = vld [vmem:[#allocation7 + $0x28] sm:$0xf]
    %v127 = vld [vmem:[#allocation7 + $0x2c] sm:$0xf]
    %v128 = vld [vmem:[#allocation7 + $0x30] sm:$0xf]
    %v129 = vld [vmem:[#allocation7 + $0x34] sm:$0xf]
    %v130 = vld [vmem:[#allocation7 + $0x38] sm:$0xf]
    %v131 = vld [vmem:[#allocation7 + $0x3c] sm:$0xf]
    %v132 = vld [vmem:[#allocation8] sm:$0xf]
    %v133 = vld [vmem:[#allocation8 + $0x4] sm:$0xf]
    %v134 = vld [vmem:[#allocation8 + $0x8] sm:$0xf]
    %v135 = vld [vmem:[#allocation8 + $0xc] sm:$0xf]
    %v136 = vld [vmem:[#allocation8 + $0x10] sm:$0xf]
    %v137 = vld [vmem:[#allocation8 + $0x14] sm:$0xf]
    %v138 = vld [vmem:[#allocation8 + $0x18] sm:$0xf]
    %v139 = vld [vmem:[#allocation8 + $0x1c] sm:$0xf]
    %v140 = vld [vmem:[#allocation8 + $0x20] sm:$0xf]
    %v141 = vld [vmem:[#allocation8 + $0x24] sm:$0xf]
    %v142 = vld [vmem:[#allocation8 + $0x28] sm:$0xf]
    %v143 = vld [vmem:[#allocation8 + $0x2c] sm:$0xf]
    %v144 = vld [vmem:[#allocation8 + $0x30] sm:$0xf]
    %v145 = vld [vmem:[#allocation8 + $0x34] sm:$0xf]
    %v146 = vld [vmem:[#allocation8 + $0x38] sm:$0xf]
    %v147 = vld [vmem:[#allocation8 + $0x3c] sm:$0xf]
    %v148 = vld [vmem:[#allocation10] sm:$0xf]
    %v149 = vld [vmem:[#allocation10 + $0x4] sm:$0xf]
    %v150 = vld [vmem:[#allocation10 + $0x8] sm:$0xf]
    %v151 = vld [vmem:[#allocation10 + $0xc] sm:$0xf]
    %v152 = vld [vmem:[#allocation10 + $0x10] sm:$0xf]
    %v153 = vld [vmem:[#allocation10 + $0x14] sm:$0xf]
    %v154 = vld [vmem:[#allocation10 + $0x18] sm:$0xf]
    %v155 = vld [vmem:[#allocation10 + $0x1c] sm:$0xf]
    %v156 = vld [vmem:[#allocation10 + $0x20] sm:$0xf]
    %v157 = vld [vmem:[#allocation10 + $0x24] sm:$0xf]
    %v158 = vld [vmem:[#allocation10 + $0x28] sm:$0xf]
    %v159 = vld [vmem:[#allocation10 + $0x2c] sm:$0xf]
    %v160 = vld [vmem:[#allocation10 + $0x30] sm:$0xf]
    %v161 = vld [vmem:[#allocation10 + $0x34] sm:$0xf]
    %v162 = vld [vmem:[#allocation10 + $0x38] sm:$0xf]
    %v163 = vld [vmem:[#allocation10 + $0x3c] sm:$0xf]
    %v164 = vld [vmem:[%s2] sm:$0x1]
    %v165 = vld [vmem:[%s4] sm:$0x1]
    %v166 = vld [vmem:[%s6] sm:$0x1]
    %v167 = vld [vmem:[%s8] sm:$0x1]
    %v168 = vld [vmem:[#allocation2] sm:$0xff]
    %v169 = vpack.c.bf16 %v168, %v168
    %v171 = vlaneseq
    %v172 = vshrl.u32 %v171, 7
    %v173 = vsub.s32 0, %v172
    %v174 = vrot.slane %v164, %v173
    %v192 = vunpack.c.l.b16 %v100
    %v193 = vunpack.c.l.b16 %v101
    %v194 = vunpack.c.l.b16 %v102
    %v195 = vunpack.c.l.b16 %v103
    %v196 = vunpack.c.l.b16 %v104
    %v197 = vunpack.c.l.b16 %v105
    %v198 = vunpack.c.l.b16 %v106
    %v199 = vunpack.c.l.b16 %v107
    %v200 = vunpack.c.l.b16 %v108
    %v201 = vunpack.c.l.b16 %v109
    %v202 = vunpack.c.l.b16 %v110
    %v203 = vunpack.c.l.b16 %v111
    %v204 = vunpack.c.l.b16 %v112
    %v205 = vunpack.c.l.b16 %v113
    %v206 = vunpack.c.l.b16 %v114
    %v207 = vunpack.c.l.b16 %v115
    %v208 = vpack.c.b16 %v193, %v192
    %v209 = vpack.c.b16 %v195, %v194
    %v210 = vpack.c.b16 %v197, %v196
    %v211 = vpack.c.b16 %v199, %v198
    %v212 = vpack.c.b16 %v201, %v200
    %v213 = vpack.c.b16 %v203, %v202
    %v214 = vpack.c.b16 %v205, %v204
    %v215 = vpack.c.b16 %v207, %v206
    %224 = vmatprep.subr.bf16.mxu0 0
    %225 = vmatpush1.bf16.msra.mxu0 %v208
    %226 = vmatprep.subr.bf16.mxu0 0
    %227 = vmatpush1.bf16.msra.mxu0 %v209
    %228 = vmatprep.subr.bf16.mxu0 0
    %229 = vmatpush1.bf16.msra.mxu0 %v210
    %230 = vmatprep.subr.bf16.mxu0 0
    %231 = vmatpush1.bf16.msra.mxu0 %v211
    %232 = vmatprep.subr.bf16.mxu0 0
    %233 = vmatpush1.bf16.msra.mxu0 %v212
    %234 = vmatprep.subr.bf16.mxu0 0
    %235 = vmatpush1.bf16.msra.mxu0 %v213
    %236 = vmatprep.subr.bf16.mxu0 0
    %237 = vmatpush1.bf16.msra.mxu0 %v214
    %238 = vmatprep.subr.bf16.mxu0 0
    %239 = vmatpush1.bf16.msra.mxu0 %v215
    %240 = vmatprep.subr.bf16.mxu0 0
    %241 = vmatpush1.bf16.msra.mxu0 0
    %242 = vmatprep.subr.bf16.mxu0 0
    %243 = vmatpush1.bf16.msra.mxu0 0
    %244 = vmatprep.subr.bf16.mxu0 0
    %245 = vmatpush1.bf16.msra.mxu0 0
    %246 = vmatprep.subr.bf16.mxu0 0
    %247 = vmatpush1.bf16.msra.mxu0 0
    %248 = vmatprep.subr.bf16.mxu0 0
    %249 = vmatpush1.bf16.msra.mxu0 0
    %250 = vmatprep.subr.bf16.mxu0 0
    %251 = vmatpush1.bf16.msra.mxu0 0
    %252 = vmatprep.subr.bf16.mxu0 0
    %253 = vmatpush1.bf16.msra.mxu0 0
    %254 = vmatprep.subr.bf16.mxu0 0
    %255 = vmatpush1.bf16.msra.mxu0 0
    %256 = vmatprep.mubr.bf16.mxu0 0
    %257 = vmatmul.mubr.bf16.gmra.mrb[0].mxu0 %v169
    %v258 = vpop.f32.mrb[0].mxu0
    %v259 = vadd.f32 %v174, %v258
    %v260 = vpop.f32.mrb[0].mxu0
    %v261 = vpop.f32.mrb[0].mxu0
    %v262 = vpop.f32.mrb[0].mxu0
    %263 = vdwg.mxu0
    %v264 = vmax.f32 %v259, 0.0
    %v265 = vpack.c.bf16 %v264, %v264
    %v267 = vlaneseq
    %v268 = vshrl.u32 %v267, 7
    %v269 = vsub.s32 0, %v268
    %v270 = vrot.slane %v165, %v269
    %v288 = vunpack.c.l.b16 %v116
    %v289 = vunpack.c.l.b16 %v117
    %v290 = vunpack.c.l.b16 %v118
    %v291 = vunpack.c.l.b16 %v119
    %v292 = vunpack.c.l.b16 %v120
    %v293 = vunpack.c.l.b16 %v121
    %v294 = vunpack.c.l.b16 %v122
    %v295 = vunpack.c.l.b16 %v123
    %v296 = vunpack.c.l.b16 %v124
    %v297 = vunpack.c.l.b16 %v125
    %v298 = vunpack.c.l.b16 %v126
    %v299 = vunpack.c.l.b16 %v127
    %v300 = vunpack.c.l.b16 %v128
    %v301 = vunpack.c.l.b16 %v129
    %v302 = vunpack.c.l.b16 %v130
    %v303 = vunpack.c.l.b16 %v131
    %v304 = vpack.c.b16 %v289, %v288
    %v305 = vpack.c.b16 %v291, %v290
    %v306 = vpack.c.b16 %v293, %v292
    %v307 = vpack.c.b16 %v295, %v294
    %v308 = vpack.c.b16 %v297, %v296
    %v309 = vpack.c.b16 %v299, %v298
    %v310 = vpack.c.b16 %v301, %v300
    %v311 = vpack.c.b16 %v303, %v302
    %320 = vmatprep.subr.bf16.mxu0 0
    %321 = vmatpush1.bf16.msra.mxu0 %v304
    %322 = vmatprep.subr.bf16.mxu0 0
    %323 = vmatpush1.bf16.msra.mxu0 %v305
    %324 = vmatprep.subr.bf16.mxu0 0
    %325 = vmatpush1.bf16.msra.mxu0 %v306
    %326 = vmatprep.subr.bf16.mxu0 0
    %327 = vmatpush1.bf16.msra.mxu0 %v307
    %328 = vmatprep.subr.bf16.mxu0 0
    %329 = vmatpush1.bf16.msra.mxu0 %v308
    %330 = vmatprep.subr.bf16.mxu0 0
    %331 = vmatpush1.bf16.msra.mxu0 %v309
    %332 = vmatprep.subr.bf16.mxu0 0
    %333 = vmatpush1.bf16.msra.mxu0 %v310
    %334 = vmatprep.subr.bf16.mxu0 0
    %335 = vmatpush1.bf16.msra.mxu0 %v311
    %336 = vmatprep.subr.bf16.mxu0 0
    %337 = vmatpush1.bf16.msra.mxu0 0
    %338 = vmatprep.subr.bf16.mxu0 0
    %339 = vmatpush1.bf16.msra.mxu0 0
    %340 = vmatprep.subr.bf16.mxu0 0
    %341 = vmatpush1.bf16.msra.mxu0 0
    %342 = vmatprep.subr.bf16.mxu0 0
    %343 = vmatpush1.bf16.msra.mxu0 0
    %344 = vmatprep.subr.bf16.mxu0 0
    %345 = vmatpush1.bf16.msra.mxu0 0
    %346 = vmatprep.subr.bf16.mxu0 0
    %347 = vmatpush1.bf16.msra.mxu0 0
    %348 = vmatprep.subr.bf16.mxu0 0
    %349 = vmatpush1.bf16.msra.mxu0 0
    %350 = vmatprep.subr.bf16.mxu0 0
    %351 = vmatpush1.bf16.msra.mxu0 0
    %352 = vmatprep.mubr.bf16.mxu0 0
    %353 = vmatmul.mubr.bf16.gmra.mrb[0].mxu0 %v265
    %v354 = vpop.f32.mrb[0].mxu0
    %v355 = vadd.f32 %v270, %v354
    %v356 = vpop.f32.mrb[0].mxu0
    %v357 = vpop.f32.mrb[0].mxu0
    %v358 = vpop.f32.mrb[0].mxu0
    %359 = vdwg.mxu0
    %v360 = vmax.f32 %v355, 0.0
    %v361 = vpack.c.bf16 %v360, %v360
    %v363 = vlaneseq
    %v364 = vshrl.u32 %v363, 7
    %v365 = vsub.s32 0, %v364
    %v366 = vrot.slane %v166, %v365
    %v384 = vunpack.c.l.b16 %v132
    %v385 = vunpack.c.l.b16 %v133
    %v386 = vunpack.c.l.b16 %v134
    %v387 = vunpack.c.l.b16 %v135
    %v388 = vunpack.c.l.b16 %v136
    %v389 = vunpack.c.l.b16 %v137
    %v390 = vunpack.c.l.b16 %v138
    %v391 = vunpack.c.l.b16 %v139
    %v392 = vunpack.c.l.b16 %v140
    %v393 = vunpack.c.l.b16 %v141
    %v394 = vunpack.c.l.b16 %v142
    %v395 = vunpack.c.l.b16 %v143
    %v396 = vunpack.c.l.b16 %v144
    %v397 = vunpack.c.l.b16 %v145
    %v398 = vunpack.c.l.b16 %v146
    %v399 = vunpack.c.l.b16 %v147
    %v400 = vpack.c.b16 %v385, %v384
    %v401 = vpack.c.b16 %v387, %v386
    %v402 = vpack.c.b16 %v389, %v388
    %v403 = vpack.c.b16 %v391, %v390
    %v404 = vpack.c.b16 %v393, %v392
    %v405 = vpack.c.b16 %v395, %v394
    %v406 = vpack.c.b16 %v397, %v396
    %v407 = vpack.c.b16 %v399, %v398
    %416 = vmatprep.subr.bf16.mxu0 0
    %417 = vmatpush1.bf16.msra.mxu0 %v400
    %418 = vmatprep.subr.bf16.mxu0 0
    %419 = vmatpush1.bf16.msra.mxu0 %v401
    %420 = vmatprep.subr.bf16.mxu0 0
    %421 = vmatpush1.bf16.msra.mxu0 %v402
    %422 = vmatprep.subr.bf16.mxu0 0
    %423 = vmatpush1.bf16.msra.mxu0 %v403
    %424 = vmatprep.subr.bf16.mxu0 0
    %425 = vmatpush1.bf16.msra.mxu0 %v404
    %426 = vmatprep.subr.bf16.mxu0 0
    %427 = vmatpush1.bf16.msra.mxu0 %v405
    %428 = vmatprep.subr.bf16.mxu0 0
    %429 = vmatpush1.bf16.msra.mxu0 %v406
    %430 = vmatprep.subr.bf16.mxu0 0
    %431 = vmatpush1.bf16.msra.mxu0 %v407
    %432 = vmatprep.subr.bf16.mxu0 0
    %433 = vmatpush1.bf16.msra.mxu0 0
    %434 = vmatprep.subr.bf16.mxu0 0
    %435 = vmatpush1.bf16.msra.mxu0 0
    %436 = vmatprep.subr.bf16.mxu0 0
    %437 = vmatpush1.bf16.msra.mxu0 0
    %438 = vmatprep.subr.bf16.mxu0 0
    %439 = vmatpush1.bf16.msra.mxu0 0
    %440 = vmatprep.subr.bf16.mxu0 0
    %441 = vmatpush1.bf16.msra.mxu0 0
    %442 = vmatprep.subr.bf16.mxu0 0
    %443 = vmatpush1.bf16.msra.mxu0 0
    %444 = vmatprep.subr.bf16.mxu0 0
    %445 = vmatpush1.bf16.msra.mxu0 0
    %446 = vmatprep.subr.bf16.mxu0 0
    %447 = vmatpush1.bf16.msra.mxu0 0
    %448 = vmatprep.mubr.bf16.mxu0 0
    %449 = vmatmul.mubr.bf16.gmra.mrb[0].mxu0 %v361
    %v450 = vpop.f32.mrb[0].mxu0
    %v451 = vadd.f32 %v366, %v450
    %v452 = vpop.f32.mrb[0].mxu0
    %v453 = vpop.f32.mrb[0].mxu0
    %v454 = vpop.f32.mrb[0].mxu0
    %455 = vdwg.mxu0
    %v456 = vmax.f32 %v451, 0.0
    %v457 = vpack.c.bf16 %v456, %v456
    %v459 = vlaneseq
    %v460 = vshrl.u32 %v459, 7
    %v461 = vsub.s32 0, %v460
    %v462 = vrot.slane %v167, %v461
    %v480 = vunpack.c.l.b16 %v148
    %v481 = vunpack.c.l.b16 %v149
    %v482 = vunpack.c.l.b16 %v150
    %v483 = vunpack.c.l.b16 %v151
    %v484 = vunpack.c.l.b16 %v152
    %v485 = vunpack.c.l.b16 %v153
    %v486 = vunpack.c.l.b16 %v154
    %v487 = vunpack.c.l.b16 %v155
    %v488 = vunpack.c.l.b16 %v156
    %v489 = vunpack.c.l.b16 %v157
    %v490 = vunpack.c.l.b16 %v158
    %v491 = vunpack.c.l.b16 %v159
    %v492 = vunpack.c.l.b16 %v160
    %v493 = vunpack.c.l.b16 %v161
    %v494 = vunpack.c.l.b16 %v162
    %v495 = vunpack.c.l.b16 %v163
    %v496 = vpack.c.b16 %v481, %v480
    %v497 = vpack.c.b16 %v483, %v482
    %v498 = vpack.c.b16 %v485, %v484
    %v499 = vpack.c.b16 %v487, %v486
    %v500 = vpack.c.b16 %v489, %v488
    %v501 = vpack.c.b16 %v491, %v490
    %v502 = vpack.c.b16 %v493, %v492
    %v503 = vpack.c.b16 %v495, %v494
    %512 = vmatprep.subr.bf16.mxu0 0
    %513 = vmatpush1.bf16.msra.mxu0 %v496
    %514 = vmatprep.subr.bf16.mxu0 0
    %515 = vmatpush1.bf16.msra.mxu0 %v497
    %516 = vmatprep.subr.bf16.mxu0 0
    %517 = vmatpush1.bf16.msra.mxu0 %v498
    %518 = vmatprep.subr.bf16.mxu0 0
    %519 = vmatpush1.bf16.msra.mxu0 %v499
    %520 = vmatprep.subr.bf16.mxu0 0
    %521 = vmatpush1.bf16.msra.mxu0 %v500
    %522 = vmatprep.subr.bf16.mxu0 0
    %523 = vmatpush1.bf16.msra.mxu0 %v501
    %524 = vmatprep.subr.bf16.mxu0 0
    %525 = vmatpush1.bf16.msra.mxu0 %v502
    %526 = vmatprep.subr.bf16.mxu0 0
    %527 = vmatpush1.bf16.msra.mxu0 %v503
    %528 = vmatprep.subr.bf16.mxu0 0
    %529 = vmatpush1.bf16.msra.mxu0 0
    %530 = vmatprep.subr.bf16.mxu0 0
    %531 = vmatpush1.bf16.msra.mxu0 0
    %532 = vmatprep.subr.bf16.mxu0 0
    %533 = vmatpush1.bf16.msra.mxu0 0
    %534 = vmatprep.subr.bf16.mxu0 0
    %535 = vmatpush1.bf16.msra.mxu0 0
    %536 = vmatprep.subr.bf16.mxu0 0
    %537 = vmatpush1.bf16.msra.mxu0 0
    %538 = vmatprep.subr.bf16.mxu0 0
    %539 = vmatpush1.bf16.msra.mxu0 0
    %540 = vmatprep.subr.bf16.mxu0 0
    %541 = vmatpush1.bf16.msra.mxu0 0
    %542 = vmatprep.subr.bf16.mxu0 0
    %543 = vmatpush1.bf16.msra.mxu0 0
    %544 = vmatprep.mubr.bf16.mxu0 0
    %545 = vmatmul.mubr.bf16.gmra.mrb[0].mxu0 %v457
    %v546 = vpop.f32.mrb[0].mxu0
    %v547 = vadd.f32 %v462, %v546
    %v548 = vpop.f32.mrb[0].mxu0
    %v549 = vpop.f32.mrb[0].mxu0
    %v550 = vpop.f32.mrb[0].mxu0
    %551 = vdwg.mxu0
    %552 = vst [vmem:[#allocation11] sm:$0xff] %v547
    // Predicated region
    $region58: #{tpu_custom_call.1} parent=1 // pred_check
      _
    $region59: #{tpu_custom_call.1} parent=1 // pred_check_branch
      %554 = sbr.rel (0) target = $region61
    $region60: #{tpu_custom_call.1} parent=1 // pred_region
      %s556 = ssub.s32 128, 128
      %557 = vsyncadd [#allocation4], %s556
      %s559 = sshll.u32 [#allocation11], 4
      %s560 = int_to_ptr.vmem [resolvable:$true] %s559
      %562 = dma.vmem_to_hbm [thread:$0]  %s560, 128, %s9, [#allocation4]
    $region61: #{tpu_custom_call.1} parent=1 // pred_fallthru
      _
    // Predicated region
    $region62: #{tpu_custom_call.1} parent=1 // pred_check
      _
    $region63: #{tpu_custom_call.1} parent=1 // pred_check_branch
      %564 = sbr.rel (0) target = $region65
    $region64: #{tpu_custom_call.1} parent=1 // pred_region
      %565 = dma.done [#allocation4], 128
    $region65: #{tpu_custom_call.1} parent=1 // pred_fallthru
      _
    %566 = vsyncpa [#allocation3], 1
    %567 = vsyncpa [#allocation6], 1
    %568 = vsyncpa [#allocation9], 1
    %569 = vsyncpa [#allocation4], 1

</llo_original>
